<compile_context>
chip_gen: v5e
topology: v5e:2x2
jax: 0.10.0
libtpu: 0.0.40
codegen_flags: <defaults>
</compile_context>

<pallas_src>
import jax
import jax.numpy as jnp
from jax.experimental import pallas as pl
from jax.experimental.pallas import tpu as pltpu


# ----------------------------------------------------------------------------
# Kernel: per-tile  (O, C) @ (C, tm)  + bias + ReLU,  spatial dim on lanes.
# ----------------------------------------------------------------------------
def _conv1x1_relu_t_kernel(w_ref, x_ref, b_ref, o_ref):
    # w_ref: (O, C)   x_ref: (C, tm)   b_ref: (O, 1)   o_ref: (O, tm)
    acc = jnp.dot(w_ref[...], x_ref[...], preferred_element_type=jnp.float32)
    acc = acc + b_ref[...]                       # broadcast bias over lanes
    o_ref[...] = jnp.maximum(acc, 0.0).astype(o_ref.dtype)


# ----------------------------------------------------------------------------
# Tiling helpers
# ----------------------------------------------------------------------------
def _cdiv(a, b):
    return (a + b - 1) // b


def _vmem_budget_bytes():
    """Scoped-VMEM budget with headroom; safe fallback covers v7x (64 MiB)."""
    try:
        cap = pltpu.get_tpu_info().vmem_capacity_bytes
    except Exception:
        cap = 64 << 20
    return int(cap * 0.75)


def _choose_tm(N, M, C, O, itemsize, budget):
    """Largest lane-tile (multiple of 128) whose double-buffered in+out tiles
    fit the VMEM budget, while keeping >= 2 grid steps for v7x's 2 TCs."""
    per_col = 2 * (C + O) * itemsize              # double-buffered x + out columns
    tm = max(128, budget // max(per_col, 1))
    tm = min(tm, 1 << 15)                         # sanity cap on tile width
    tm = max(128, (tm // 128) * 128)
    m_pad128 = _cdiv(M, 128) * 128
    tm = min(tm, m_pad128)
    # make sure the grid has at least 2 steps so both v7x TensorCores get work
    if N * _cdiv(m_pad128, tm) < 2 and m_pad128 > 128:
        tm = max(128, (_cdiv(m_pad128 // 2, 128)) * 128)
        while N * _cdiv(m_pad128, tm) < 2 and tm > 128:
            tm -= 128
    return tm


# ----------------------------------------------------------------------------
# Wrapper: 1x1 conv + ReLU directly on NCHW, output in pre-shuffle NCHW layout
# ----------------------------------------------------------------------------
def conv1x1_relu_nchw(x_nchw, w_oc, b, *, tm=None, compute_dtype=None):
    """x_nchw: (N, C, H, W); w_oc: (O, C); b: (O,)  ->  (N, O, H, W)."""
    N, C, H, W = x_nchw.shape
    O = w_oc.shape[0]
    M = H * W
    out_dtype = x_nchw.dtype

    # free reshape: NCHW is contiguous as (N, C, H*W); spatial lands on lanes
    x_ncm = x_nchw.reshape(N, C, M)
    if compute_dtype is not None:                 # optional bf16 input stream
        x_ncm = x_ncm.astype(compute_dtype)
        w_oc = w_oc.astype(compute_dtype)

    itemsize = jnp.dtype(x_ncm.dtype).itemsize
    budget = _vmem_budget_bytes()
    if tm is None:
        tm = _choose_tm(N, M, C, O, itemsize, budget)

    m_tiles = _cdiv(M, tm)
    M_pad = m_tiles * tm
    if M_pad != M:
        x_ncm = jnp.pad(x_ncm, ((0, 0), (0, 0), (0, M_pad - M)))

    b2 = b.reshape(O, 1).astype(jnp.float32)

    y = pl.pallas_call(
        _conv1x1_relu_t_kernel,
        out_shape=jax.ShapeDtypeStruct((N, O, M_pad), out_dtype),
        grid_spec=pltpu.PrefetchScalarGridSpec(
            num_scalar_prefetch=0,
            grid=(N, m_tiles),
            in_specs=[
                pl.BlockSpec((O, C), lambda n, m: (0, 0)),          # weights (resident)
                pl.BlockSpec((None, C, tm), lambda n, m: (n, 0, m)),  # x tile, lanes = spatial
                pl.BlockSpec((O, 1), lambda n, m: (0, 0)),          # bias (resident)
            ],
            out_specs=pl.BlockSpec((None, O, tm), lambda n, m: (n, 0, m)),
        ),
        compiler_params=pltpu.CompilerParams(
            dimension_semantics=("parallel", "parallel"),
            vmem_limit_bytes=budget,
        ),
    )(w_oc, x_ncm, b2)

    if M_pad != M:
        y = y[:, :, :M]
    return y.reshape(N, O, H, W)


# ----------------------------------------------------------------------------
# Params (ICNR init, matching the PyTorch init_weights) and full forward pass
# ----------------------------------------------------------------------------
def make_params(key, n_channels, scale):
    """weight[o, c] = k0[o // scale**2, c],  k0 ~ kaiming_normal (std=sqrt(2/C));
    bias ~ U(-1/sqrt(C), 1/sqrt(C)).  Returns w of shape (O, C) and b of (O,)."""
    C = n_channels
    O = n_channels * scale ** 2
    k_w, k_b = jax.random.split(key)
    std = (2.0 / C) ** 0.5
    k0 = jax.random.normal(k_w, (C, C), dtype=jnp.float32) * std     # (C_out_base, C_in)
    w_full = jnp.repeat(k0, scale ** 2, axis=0)                      # (O, C): ICNR replication
    bound = 1.0 / (C ** 0.5)
    b = jax.random.uniform(k_b, (O,), dtype=jnp.float32,
                           minval=-bound, maxval=bound)
    return w_full, b


def pixel_shuffle_module(x_nchw, w_oc, b, scale):
    """Forward pass.  x_nchw: (N, C, H, W) -> (N, C, H*scale, W*scale)."""
    N, C, H, W = x_nchw.shape
    r = scale
    # kernel output is already PyTorch's pre-shuffle (N, C*r*r, H, W) layout
    y = conv1x1_relu_nchw(x_nchw, w_oc, b)
    # PixelShuffle: out[n, c, h*r+i, w*r+j] = y[n, c*r*r + i*r + j, h, w]
    y = y.reshape(N, C, r, r, H, W)
    y = jnp.transpose(y, (0, 1, 4, 2, 5, 3))                         # (N, C, H, r, W, r)
    return y.reshape(N, C, H * r, W * r)
    # TODO(synk): the final shuffle transpose could also be folded into the
    # kernel by tiling tm = k*W and writing (C, r, W*r) slabs lane-densely.


if __name__ == "__main__":
    key = jax.random.PRNGKey(0)
    k_x, k_p = jax.random.split(key)

    N, C, H, W = 2, 4, 16, 16
    scale = 2

    x = jax.random.normal(k_x, (N, C, H, W), dtype=jnp.float32)
    w, b = make_params(k_p, C, scale)

    out = pixel_shuffle_module(x, w, b, scale)
    out = jax.block_until_ready(out)

    # sanity check against a pure-JAX reference
    ref_conv = jnp.einsum("nchw,oc->nohw", x, w) + b[None, :, None, None]
    ref_conv = jnp.maximum(ref_conv, 0.0)
    rr = ref_conv.reshape(N, C, scale, scale, H, W)
    ref = jnp.transpose(rr, (0, 1, 4, 2, 5, 3)).reshape(N, C, H * scale, W * scale)
    assert out.shape == (N, C, H * scale, W * scale)
    assert jnp.allclose(out, ref, atol=1e-5, rtol=1e-5)

    print("KERNEL_OK")
</pallas_src>

<mosaic_0001>
module attributes {stable_mosaic.version = 11 : i64} {
  func.func @_conv1x1_relu_t_kernel(%arg0: i32, %arg1: i32, %arg2: memref<16x4xf32, #tpu.memory_space<vmem>>, %arg3: memref<1x4x256xf32, #tpu.memory_space<vmem>>, %arg4: memref<16x1xf32, #tpu.memory_space<vmem>>, %arg5: memref<1x16x256xf32, #tpu.memory_space<vmem>>) attributes {dimension_semantics = [#tpu.dimension_semantics<parallel>, #tpu.dimension_semantics<parallel>], iteration_bounds = array<i64: 2, 1>, scalar_prefetch = 0 : i64, scratch_operands = 0 : i64, tpu.core_type = #tpu.core_type<tc>, window_params = [{pipeline_mode = #tpu.pipeline_mode<synchronous>, transform_indices = @transform_0, window_bounds = array<i64: 16, 4>}, {transform_indices = @transform_1, window_bounds = array<i64: 1, 4, 256>}, {pipeline_mode = #tpu.pipeline_mode<synchronous>, transform_indices = @transform_2, window_bounds = array<i64: 16, 1>}, {transform_indices = @transform_3, window_bounds = array<i64: 1, 16, 256>}]} {
    %c0 = arith.constant 0 : index
    %c0_0 = arith.constant 0 : index
    %0 = vector.load %arg2[%c0, %c0_0] : memref<16x4xf32, #tpu.memory_space<vmem>>, vector<16x4xf32>
    %c0_1 = arith.constant 0 : index
    %c0_2 = arith.constant 0 : index
    %c0_3 = arith.constant 0 : index
    %1 = vector.load %arg3[%c0_1, %c0_2, %c0_3] : memref<1x4x256xf32, #tpu.memory_space<vmem>>, vector<1x4x256xf32>
    %2 = vector.shape_cast %1 : vector<1x4x256xf32> to vector<4x256xf32>
    %cst = arith.constant dense<0.000000e+00> : vector<16x256xf32>
    %3 = tpu.matmul %0, %2, %cst {dimension_numbers = #tpu.dot_dimension_numbers<[1], [0], [0], [1], [0, 0, 1, 1], [], []>} : vector<16x4xf32>, vector<4x256xf32>, vector<16x256xf32> -> vector<16x256xf32>
    %c0_4 = arith.constant 0 : index
    %c0_5 = arith.constant 0 : index
    %4 = vector.load %arg4[%c0_4, %c0_5] : memref<16x1xf32, #tpu.memory_space<vmem>>, vector<16x1xf32>
    %5 = vector.broadcast %4 : vector<16x1xf32> to vector<16x256xf32>
    %6 = arith.addf %3, %5 : vector<16x256xf32>
    %cst_6 = arith.constant 0.000000e+00 : f32
    %7 = vector.broadcast %cst_6 : f32 to vector<16x256xf32>
    %8 = arith.maximumf %6, %7 : vector<16x256xf32>
    %c0_7 = arith.constant 0 : index
    %c0_8 = arith.constant 0 : index
    %c0_9 = arith.constant 0 : index
    %9 = vector.load %arg5[%c0_7, %c0_8, %c0_9] : memref<1x16x256xf32, #tpu.memory_space<vmem>>, vector<1x16x256xf32>
    %10 = vector.shape_cast %9 : vector<1x16x256xf32> to vector<16x256xf32>
    %11 = vector.shape_cast %8 : vector<16x256xf32> to vector<1x16x256xf32>
    tpu.vector_store %arg5[%c0_7, %c0_8, %c0_9], %11 {strides = array<i32>} : memref<1x16x256xf32, #tpu.memory_space<vmem>>, vector<1x16x256xf32>,
    return
  }
  func.func @transform_0(%arg0: i32, %arg1: i32) -> (i32, i32) {
    %c0_i32 = arith.constant 0 : i32
    %c0_i32_0 = arith.constant 0 : i32
    %c0_i32_1 = arith.constant 0 : i32
    return %c0_i32, %c0_i32_0 : i32, i32
  }
  func.func @transform_1(%arg0: i32, %arg1: i32) -> (i32, i32, i32) {
    %c0_i32 = arith.constant 0 : i32
    %c0_i32_0 = arith.constant 0 : i32
    return %arg0, %c0_i32, %arg1 : i32, i32, i32
  }
  func.func @transform_2(%arg0: i32, %arg1: i32) -> (i32, i32) {
    %c0_i32 = arith.constant 0 : i32
    %c0_i32_0 = arith.constant 0 : i32
    %c0_i32_1 = arith.constant 0 : i32
    return %c0_i32, %c0_i32_0 : i32, i32
  }
  func.func @transform_3(%arg0: i32, %arg1: i32) -> (i32, i32, i32) {
    %c0_i32 = arith.constant 0 : i32
    %c0_i32_0 = arith.constant 0 : i32
    return %arg0, %c0_i32, %arg1 : i32, i32, i32
  }
}

</mosaic_0001>

<llo_original>
// kernel: tpu_custom_call.1
$region0: #{tpu_custom_call.1}
  #allocation0 [shape = 'u32[]', space=smem, size = 0x4, offset = 0x4, fixed_abs, tag = 'smem constant byte address 0x4 - core index']
  #allocation1 [shape = 'u32[72,128]{1,0:T(1,128)}', space=vmem, size = 0x9000, scoped, tag = 'internal scratch']
  %s0 = inlined_call_operand.vmem [shape: f32[16,4], index: 0, kind: input, shape index: {}]
  %s1 = inlined_call_operand.vmem [shape: f32[2,4,256], index: 1, kind: input, shape index: {}]
  %s2 = inlined_call_operand.vmem [shape: f32[16,1], index: 2, kind: input, shape index: {}]
  %s3 = inlined_call_operand.hbm [shape: f32[2,16,256], index: 3, kind: output, shape index: {}]
  %s4 = sld [smem:[#allocation0]]
  $region45: #{tpu_custom_call.1} parent=0
    _
  %s6 = ssub.s32 1, %s4
  %s7 = scalar_select 0, %s6, %s4
  $region1: #{tpu_custom_call.1} parent=0
    #allocation2 [shape = 'u8[32768]{0}', space=vmem, size = 0x8000, scoped, tag = 'output window, operand 0']
    #allocation3 [shape = 's32[2]{0}', space=sflag, size = 0x8, scoped, tag = 'scoped memory for tpu_custom_call.1']
    %8 = vsyncpa [#allocation3], 0
    %s9 = scalar_lea.sflag [#allocation3], 1
    %10 = vsyncpa %s9, 0
    loop: start=0, step=1, limit=4
    $region2: #{tpu_custom_call.1} parent=1 // loop_pre_header
      _
    $region3: #{tpu_custom_call.1} parent=1 // loop_header
      %s12 = sphi 0, %s16
      %p13 = scmp.ge.s32.totalorder %s12, 4
      %s19 = sphi 0, %s31
      %s20 = sphi 0, %s27
      %s21 = sphi 0, %s19
      %s22 = sphi 0, %s20
      %s23 = sphi 0, %s21
      %s24 = sphi 0, %s22
      %s32 = sphi 0, %s32
      %s34 = sphi 0, %s32
      %s35 = sphi 0, %s34
      %s49 = sphi 0, %s35
      %s57 = sphi 0, %s59
      %s60 = sphi 0, %s57
      %s61 = sphi 0, %s60
      %s77 = sphi 0, %s61
      %s81 = sphi 0, %s81
      %s83 = sphi 0, %s81
      %s84 = sphi 0, %s83
      %s98 = sphi 0, %s84
      %s106 = sphi 0, %s108
      %s109 = sphi 0, %s106
      %s110 = sphi 0, %s109
      %s126 = sphi 0, %s110
    $region4: #{tpu_custom_call.1} parent=1 // loop_header_branch
      %15 = sbr.rel (%p13) target = $region8
    $region5: #{tpu_custom_call.1} parent=1 // loop_body
      %s17 = ssub.s32 %s12, 1
      %s18 = ssub.s32 %s12, 2
      %s25 = sadd.s32 1, %s20
      %p26 = scmp.ge.s32.totalorder %s25, 1
      %s27 = scalar_select %p26, 0, %s25
      %s28 = sadd.s32 1, %s19
      %s29 = scalar_select %p26, %s28, %s19
      %p30 = scmp.ge.s32.totalorder %s29, 2
      %s31 = scalar_select %p30, 0, %s29
      %s33 = sadd.s32 %s32, 1
      %p36 = scmp.eq.s32.totalorder %s12, 1
      %p37 = scmp.ne.s32.totalorder %s32, %s34
      %p38 = scmp.eq.s32.totalorder %s12, 0
      %p39 = por %p37, %p38
      %p40 = scmp.ne.s32.totalorder %s32, %s34
      %p41 = scmp.eq.s32.totalorder %s17, 1
      %p42 = por %p40, %p41
      %p43 = scmp.ne.s32.totalorder %s34, %s35
      %p44 = scmp.eq.s32.totalorder %s17, 0
      %p45 = por %p43, %p44
      %p46 = scmp.ne.s32.totalorder %s34, %s35
      %p47 = scmp.eq.s32.totalorder %s18, 1
      %p48 = por %p46, %p47
      %p50 = scmp.ne.s32.totalorder %s35, %s49
      %p51 = scmp.eq.s32.totalorder %s18, 0
      %p52 = por %p50, %p51
      %s53 = ssub.s32 %s19, %s31
      %s54 = ssub.s32 %s20, %s27
      %s55 = sor.u32 %s53, %s54
      %p56 = scmp.eq.s32.totalorder %s55, 0
      %s58 = sadd.s32 %s57, 1
      %s59 = scalar_select %p56, %s57, %s58
      %p62 = pneg %p56
      %p63 = scmp.eq.s32.totalorder %s12, 1
      %p64 = por %p62, %p63
      %p65 = scmp.ne.s32.totalorder %s57, %s60
      %p66 = scmp.eq.s32.totalorder %s12, 0
      %p67 = por %p65, %p66
      %p68 = scmp.ne.s32.totalorder %s57, %s60
      %p69 = scmp.eq.s32.totalorder %s17, 1
      %p70 = por %p68, %p69
      %p71 = scmp.ne.s32.totalorder %s60, %s61
      %p72 = scmp.eq.s32.totalorder %s17, 0
      %p73 = por %p71, %p72
      %p74 = scmp.ne.s32.totalorder %s60, %s61
      %p75 = scmp.eq.s32.totalorder %s18, 1
      %p76 = por %p74, %p75
      %p78 = scmp.ne.s32.totalorder %s61, %s77
      %p79 = scmp.eq.s32.totalorder %s18, 0
      %p80 = por %p78, %p79
      %s82 = sadd.s32 %s81, 1
      %p85 = scmp.eq.s32.totalorder %s12, 1
      %p86 = scmp.ne.s32.totalorder %s81, %s83
      %p87 = scmp.eq.s32.totalorder %s12, 0
      %p88 = por %p86, %p87
      %p89 = scmp.ne.s32.totalorder %s81, %s83
      %p90 = scmp.eq.s32.totalorder %s17, 1
      %p91 = por %p89, %p90
      %p92 = scmp.ne.s32.totalorder %s83, %s84
      %p93 = scmp.eq.s32.totalorder %s17, 0
      %p94 = por %p92, %p93
      %p95 = scmp.ne.s32.totalorder %s83, %s84
      %p96 = scmp.eq.s32.totalorder %s18, 1
      %p97 = por %p95, %p96
      %p99 = scmp.ne.s32.totalorder %s84, %s98
      %p100 = scmp.eq.s32.totalorder %s18, 0
      %p101 = por %p99, %p100
      %s102 = ssub.s32 %s19, %s31
      %s103 = ssub.s32 %s20, %s27
      %s104 = sor.u32 %s102, %s103
      %p105 = scmp.eq.s32.totalorder %s104, 0
      %s107 = sadd.s32 %s106, 1
      %s108 = scalar_select %p105, %s106, %s107
      %p111 = pneg %p105
      %p112 = scmp.eq.s32.totalorder %s12, 1
      %p113 = por %p111, %p112
      %p114 = scmp.ne.s32.totalorder %s106, %s109
      %p115 = scmp.eq.s32.totalorder %s12, 0
      %p116 = por %p114, %p115
      %p117 = scmp.ne.s32.totalorder %s106, %s109
      %p118 = scmp.eq.s32.totalorder %s17, 1
      %p119 = por %p117, %p118
      %p120 = scmp.ne.s32.totalorder %s109, %s110
      %p121 = scmp.eq.s32.totalorder %s17, 0
      %p122 = por %p120, %p121
      %p123 = scmp.ne.s32.totalorder %s109, %s110
      %p124 = scmp.eq.s32.totalorder %s18, 1
      %p125 = por %p123, %p124
      %p127 = scmp.ne.s32.totalorder %s110, %s126
      %p128 = scmp.eq.s32.totalorder %s18, 0
      %p129 = por %p127, %p128
      %p130 = scmp.le.s32.totalorder 1, %s12
      %p131 = scmp.lt.s32.totalorder %s12, 3
      %p132 = pnand %p130, %p131
      %p133 = pneg %p132
      // Predicated region
      $region9: #{tpu_custom_call.1} parent=5 // pred_check
        _
      $region10: #{tpu_custom_call.1} parent=5 // pred_check_branch
        %135 = sbr.rel (%p132) target = $region12
      $region11: #{tpu_custom_call.1} parent=5 // pred_region
        %s136 = ssub.s32 %s12, 1
        // Predicated region
        $region13: #{tpu_custom_call.1} parent=11 // pred_check
          %p137 = pneg %p45
        $region14: #{tpu_custom_call.1} parent=11 // pred_check_branch
          %139 = sbr.rel (%p137) target = $region16
        $region15: #{tpu_custom_call.1} parent=11 // pred_region
          _
        $region16: #{tpu_custom_call.1} parent=11 // pred_fallthru
          _
        // Predicated region
        $region17: #{tpu_custom_call.1} parent=11 // pred_check
          %p140 = pneg %p94
        $region18: #{tpu_custom_call.1} parent=11 // pred_check_branch
          %142 = sbr.rel (%p140) target = $region20
        $region19: #{tpu_custom_call.1} parent=11 // pred_region
          _
        $region20: #{tpu_custom_call.1} parent=11 // pred_fallthru
          _
      $region12: #{tpu_custom_call.1} parent=5 // pred_fallthru
        _
      %p143 = scmp.lt.s32.totalorder %s12, 2
      // Predicated region
      $region21: #{tpu_custom_call.1} parent=5 // pred_check
        %p144 = pneg %p143
      $region22: #{tpu_custom_call.1} parent=5 // pred_check_branch
        %146 = sbr.rel (%p144) target = $region24
      $region23: #{tpu_custom_call.1} parent=5 // pred_region
        // Predicated region
        $region25: #{tpu_custom_call.1} parent=23 // pred_check
          %p147 = pneg %p67
        $region26: #{tpu_custom_call.1} parent=23 // pred_check_branch
          %149 = sbr.rel (%p147) target = $region28
        $region27: #{tpu_custom_call.1} parent=23 // pred_region
          %s150 = smul.u32 2, %s20
          %p151 = scmp.lt.s32.totalorder %s19, 1
          %s152 = scalar_select %p151, %s19, 1
          %p153 = scmp.lt.s32.totalorder %s150, 1
          %s154 = scalar_select %p153, %s150, 1
          %s155 = smul.addr %s152, 2
          %s156 = sadd.s32 %s154, %s155
          %s157 = smul.addr %s156, 4
          %s158 = scalar_lea.vmem %s1, %s157
          %s159 = smul.u32 2, %s20
        $region28: #{tpu_custom_call.1} parent=23 // pred_fallthru
          _
      $region24: #{tpu_custom_call.1} parent=5 // pred_fallthru
        _
      %p160 = scmp.le.s32.totalorder 1, %s12
      %p161 = scmp.lt.s32.totalorder %s12, 3
      %p162 = pnand %p160, %p161
      %p163 = pneg %p162
      // Predicated region
      $region29: #{tpu_custom_call.1} parent=5 // pred_check
        _
      $region30: #{tpu_custom_call.1} parent=5 // pred_check_branch
        %165 = sbr.rel (%p162) target = $region32
      $region31: #{tpu_custom_call.1} parent=5 // pred_region
        %s166 = ssub.s32 %s12, 1
        %p167 = pneg %p45
        %p168 = pneg %p42
        %s169 = smul.u32 2, %s22
        %p170 = scmp.lt.s32.totalorder %s21, 1
        %s171 = scalar_select %p170, %s21, 1
        %p172 = scmp.lt.s32.totalorder %s169, 1
        %s173 = scalar_select %p172, %s169, 1
        %s174 = smul.addr %s171, 2
        %s175 = sadd.s32 %s173, %s174
        %s176 = smul.addr %s175, 4
        %s177 = scalar_lea.vmem %s1, %s176
        %p178 = pneg %p73
        %p179 = pneg %p70
        %p180 = pneg %p94
        %p181 = pneg %p91
        %p182 = pneg %p122
        %p183 = pneg %p119
        %s184 = sand.u32 %s109, 1
        %s185 = scalar_lea.sflag [#allocation3], %s184
        %s186 = sand.u32 %s109, 1
        %s187 = smul.addr %s186, 32
        %s188 = scalar_lea.vmem [#allocation2], %s187
        %s189 = smul.u32 2, %s22
        %p190 = scmp.lt.s32.totalorder %s21, 1
        %s191 = scalar_select %p190, %s21, 1
        %p192 = scmp.lt.s32.totalorder %s189, 1
        %s193 = scalar_select %p192, %s189, 1
        %s194 = smul.addr %s191, 2
        %s195 = sadd.s32 %s193, %s194
        %s196 = smul.addr %s195, 4
        %s197 = scalar_lea.vmem %s1, %s196
        %s198 = smul.u32 2, %s22
        %s199 = smul.u32 2, %s22
        %v200 = vld [vmem:[%s0] sm:$0xff]
        %v201 = vld [vmem:[%s0 + $0x8] sm:$0xff]
        %v202 = vld [vmem:[%s197] sm:$0xff]
        %v203 = vld [vmem:[%s2] sm:$0xff]
        %v204 = vld [vmem:[%s2 + $0x8] sm:$0xff]
        %206 = vset.pattern.permute.xlu0 0
        %207 = vperm.xlu0 %206, %v203
        %v208 = vpop.permute.xlu0 %207
        %211 = vset.pattern.permute.xlu0 0
        %212 = vperm.xlu0 %211, %v204
        %v213 = vpop.permute.xlu0 %212
        %216 = vst [vmem:[#allocation1] ss:$2 sm:$0xff] %v202
        %v217 = vld.sshfl [vmem:[#allocation1] sm:$0xff pattern:$0x75316420]
        %v218 = vld.sshfl [vmem:[#allocation1 + $0x8] sm:$0xff pattern:$0x75316420]
        %vm219 = vcmask 31744
        %v221 = vsel %vm219, %v200, 0
        %v224 = vsel %vm219, %v201, 0
        %vm226 = vcmask 1043456
        %v227 = vsel %vm226, %v217, 0
        %v229 = vsel %vm226, %v218, 0
        %231 = vmatpush.msra.mxu0 0.0
        %232 = vmatpush.msra.mxu0 0.0
        %233 = vmatpush.msra.mxu0 0.0
        %234 = vmatpush.msra.mxu0 0.0
        %235 = vmatpush.msra.mxu0 0.0
        %236 = vmatpush.msra.mxu0 0.0
        %237 = vmatpush.msra.mxu0 0.0
        %238 = vmatpush.msra.mxu0 0.0
        %239 = vmatpush.msra.mxu0 0.0
        %240 = vmatpush.msra.mxu0 0.0
        %241 = vmatpush.msra.mxu0 0.0
        %242 = vmatpush.msra.mxu0 0.0
        %243 = vmatpush.msra.mxu0 0.0
        %244 = vmatpush.msra.mxu0 0.0
        %245 = vmatpush.msra.mxu0 0.0
        %246 = vmatpush.msra.mxu0 %v227
        %247 = vmatmul.f32.gmra.mxu0 %v221
        %v248 = vpop.f32.mrf.mxu0
        %v249 = vadd.f32 %v208, %v248
        %250 = vmatmul.f32.gmra.mxu0 %v224
        %v251 = vpop.f32.mrf.mxu0
        %v252 = vadd.f32 %v213, %v251
        %253 = vdwg.mxu0
        %254 = vmatpush.msra.mxu0 0.0
        %255 = vmatpush.msra.mxu0 0.0
        %256 = vmatpush.msra.mxu0 0.0
        %257 = vmatpush.msra.mxu0 0.0
        %258 = vmatpush.msra.mxu0 0.0
        %259 = vmatpush.msra.mxu0 0.0
        %260 = vmatpush.msra.mxu0 0.0
        %261 = vmatpush.msra.mxu0 0.0
        %262 = vmatpush.msra.mxu0 0.0
        %263 = vmatpush.msra.mxu0 0.0
        %264 = vmatpush.msra.mxu0 0.0
        %265 = vmatpush.msra.mxu0 0.0
        %266 = vmatpush.msra.mxu0 0.0
        %267 = vmatpush.msra.mxu0 0.0
        %268 = vmatpush.msra.mxu0 0.0
        %269 = vmatpush.msra.mxu0 %v229
        %270 = vmatmul.f32.gmra.mxu0 %v221
        %v271 = vpop.f32.mrf.mxu0
        %v272 = vadd.f32 %v208, %v271
        %273 = vmatmul.f32.gmra.mxu0 %v224
        %v274 = vpop.f32.mrf.mxu0
        %v275 = vadd.f32 %v213, %v274
        %276 = vdwg.mxu0
        %v277 = vmax.f32 %v249, 0.0
        %v278 = vmax.f32 %v272, 0.0
        %v279 = vmax.f32 %v252, 0.0
        %v280 = vmax.f32 %v275, 0.0
        %281 = vst [vmem:[%s188] sm:$0xff] %v277
        %282 = vst [vmem:[%s188 + $0x8] sm:$0xff] %v278
        %283 = vst [vmem:[%s188 + $0x10] sm:$0xff] %v279
        %284 = vst [vmem:[%s188 + $0x18] sm:$0xff] %v280
        %s285 = sand.u32 %s109, 1
        %s286 = scalar_lea.sflag [#allocation3], %s285
        %s287 = sand.u32 %s109, 1
        %s288 = smul.addr %s287, 32
        %s289 = scalar_lea.vmem [#allocation2], %s288
        // Predicated region
        $region33: #{tpu_custom_call.1} parent=31 // pred_check
          %p290 = pneg %p119
        $region34: #{tpu_custom_call.1} parent=31 // pred_check_branch
          %292 = sbr.rel (%p290) target = $region36
        $region35: #{tpu_custom_call.1} parent=31 // pred_region
          %s293 = smul.u32 2, %s22
          %295 = vsyncadd %s286, 0
          %s296 = smul.addr %s21, 4
          %s297 = sadd.s32 %s293, %s296
          %s298 = smul.addr %s297, 8
          %s299 = scalar_lea.hbm %s3, %s298
          %s300 = sshll.u32 %s289, 4
          %s301 = int_to_ptr.vmem [resolvable:$true] %s300
          %s302 = sshll.u32 %s299, 4
          %s303 = int_to_ptr.hbm [resolvable:$true] %s302
          %308 = dma.vmem_to_hbm [thread:$0]  %s301, 512, %s303, %s286, 256, 256, 16
        $region36: #{tpu_custom_call.1} parent=31 // pred_fallthru
          _
      $region32: #{tpu_custom_call.1} parent=5 // pred_fallthru
        _
      %p309 = scmp.le.s32.totalorder 2, %s12
      // Predicated region
      $region37: #{tpu_custom_call.1} parent=5 // pred_check
        %p310 = pneg %p309
      $region38: #{tpu_custom_call.1} parent=5 // pred_check_branch
        %312 = sbr.rel (%p310) target = $region40
      $region39: #{tpu_custom_call.1} parent=5 // pred_region
        %s313 = ssub.s32 %s12, 2
        // Predicated region
        $region41: #{tpu_custom_call.1} parent=39 // pred_check
          %p314 = pneg %p125
        $region42: #{tpu_custom_call.1} parent=39 // pred_check_branch
          %316 = sbr.rel (%p314) target = $region44
        $region43: #{tpu_custom_call.1} parent=39 // pred_region
          %s317 = sand.u32 %s110, 1
          %s318 = scalar_lea.sflag [#allocation3], %s317
          %s319 = sand.u32 %s110, 1
          %s320 = smul.addr %s319, 32
          %s321 = scalar_lea.vmem [#allocation2], %s320
          %323 = dma.done %s318, 512
        $region44: #{tpu_custom_call.1} parent=39 // pred_fallthru
          _
      $region40: #{tpu_custom_call.1} parent=5 // pred_fallthru
        _
    $region6: #{tpu_custom_call.1} parent=1 // loop_footer
      %s16 = sadd.s32 1, %s12
    $region7: #{tpu_custom_call.1} parent=1 // loop_footer_branch
      %11 = sbr.rel target = $region3
    $region8: #{tpu_custom_call.1} parent=1 // loop_exit
      _
    %324 = vsyncpa [#allocation3], 1
    %s325 = scalar_lea.sflag [#allocation3], 1
    %326 = vsyncpa %s325, 1

</llo_original>
